<compile_context>
chip_gen: v7x
topology: tpu7x:2x2x1
jax: 0.10.0
libtpu: 0.0.40
codegen_flags: <defaults>
</compile_context>

<pallas_src>
import jax
import jax.numpy as jnp
import numpy as np
from jax.experimental import pallas as pl
from jax.experimental.pallas import tpu as pltpu

LANE = 128


def _round_up(n, m):
    return (n + m - 1) // m * m


def rbfn_kernel(xt_ref, wcomb_ref, bcsq_ref, beta_ref, wr_ref, b_ref, o_ref):
    c_pad = bcsq_ref.shape[0]
    xt = xt_ref[...].astype(jnp.float32)                               # (D, TN)

    # Fused tiny-K matmul: [2*beta*centers ; Wx] @ x^T -> (Cp + n_out, TN)
    fused = jnp.dot(wcomb_ref[...], xt, preferred_element_type=jnp.float32)
    cross2 = fused[:c_pad, :]                  # 2*beta_c*(centers_c . x_n)   (Cp, TN)
    xw_t = fused[c_pad:, :]                    # Wx @ x^T                     (n_out, TN)

    # beta-scaled squared distance via beta*(||x||^2 + ||c||^2 - 2 c.x), clamped at 0
    # (the expansion can go slightly negative from cancellation; beta > 0 keeps the
    # clamp equivalent to clamping the unscaled distance).
    x_sq = jnp.sum(xt * xt, axis=0, keepdims=True)                     # (1, TN)
    z = jnp.maximum(beta_ref[...] * x_sq + bcsq_ref[...] - cross2, 0.0)
    radial = jnp.exp(-z)                                               # (Cp, TN) f32

    # Dominant matmul in Wr's dtype (bf16 by default), f32 accumulation on the MXU.
    acc = jnp.dot(wr_ref[...], radial.astype(wr_ref.dtype),
                  preferred_element_type=jnp.float32)                  # (n_out, TN)
    o_ref[...] = (acc + xw_t + b_ref[...]).astype(o_ref.dtype)


def rbfn_forward(x, centers, beta, w, b, *, tile_n=1024,
                 stream_dtype=jnp.float32, wr_dtype=jnp.bfloat16,
                 out_dtype=jnp.float32):
    """x: [N, D], centers: [C, D], beta: [1, C] (all > 0), w: [n_out, D + C], b: [n_out].

    Returns [N, n_out], matching RBFN.forward.
    """
    N, D = x.shape
    C = centers.shape[0]
    n_out = w.shape[0]

    # ---- wrapper-side, loop-invariant layout plumbing (plain JAX) ----
    c_pad = _round_up(C, LANE)
    centers_f = centers.astype(jnp.float32)
    beta_f = beta.reshape(-1).astype(jnp.float32)          # (C,); must be > 0

    # Fused K=D weight: rows [0, C) = 2*beta_c*centers_c, rows [c_pad, c_pad+n_out) = Wx.
    wcomb = jnp.zeros((c_pad + n_out, D), jnp.float32)
    wcomb = wcomb.at[:C, :].set(2.0 * beta_f[:, None] * centers_f)
    wcomb = wcomb.at[c_pad:, :].set(w[:, :D].astype(jnp.float32))
    # beta*||c||^2 and beta as (c_pad, 1) columns. Padded centers produce finite radial
    # values (exp(-beta*||x||^2)) that are killed by the zero Wr columns below.
    bcsq = jnp.zeros((c_pad, 1), jnp.float32).at[:C, 0].set(
        beta_f * jnp.sum(centers_f * centers_f, axis=1))
    beta_col = jnp.ones((c_pad, 1), jnp.float32).at[:C, 0].set(beta_f)
    # Radial part of the linear layer (bf16-resident by default) and bias column.
    wr = jnp.zeros((n_out, c_pad), jnp.float32).at[:, :C].set(
        w[:, D:].astype(jnp.float32)).astype(wr_dtype)
    b_col = b.reshape(n_out, 1).astype(jnp.float32)

    # Tile over the lane (batch) axis: multiple of 128 lanes, and <= ceil(N/2) so the
    # grid has >= 2 steps whenever N >= 256 (megacore sharding on v7x).
    tn = min(_round_up(tile_n, LANE), _round_up(N, LANE),
             max(LANE, _round_up((N + 1) // 2, LANE)))
    n_pad = _round_up(N, tn)
    grid = (n_pad // tn,)

    # x transposed to (D, N_pad) so streamed tiles are lane-dense; padded columns are
    # zero (their radial = exp(-beta*||c||^2) is finite and discarded by the final slice).
    x_t = jnp.zeros((D, n_pad), stream_dtype).at[:, :N].set(x.T.astype(stream_dtype))

    # ---- VMEM budget with layout-padded sizes (sublane tile = 32/itemsize, 128 lanes) ----
    def padded_bytes(shape, dtype):
        r, c = shape
        item = jnp.dtype(dtype).itemsize
        return _round_up(r, 32 // item) * _round_up(c, LANE) * item

    vmem_used = 2 * (  # every block is double-buffered by the pipeline
        padded_bytes((D, tn), stream_dtype)
        + padded_bytes((n_out, tn), out_dtype)
        + padded_bytes((c_pad + n_out, D), jnp.float32)
        + 2 * padded_bytes((c_pad, 1), jnp.float32)
        + padded_bytes((n_out, c_pad), wr_dtype)
        + padded_bytes((n_out, 1), jnp.float32))
    vmem_limit = int(min(48 * 2**20, max(16 * 2**20, 4 * vmem_used)))

    cost = pl.CostEstimate(
        flops=2 * N * (D * (C + n_out) + C * n_out) + 6 * N * C,
        transcendentals=N * C,
        bytes_accessed=(N * D * jnp.dtype(stream_dtype).itemsize
                        + N * n_out * jnp.dtype(out_dtype).itemsize
                        + (centers.size + beta.size + w.size + b.size) * 4),
    )

    def const_spec(shape):
        return pl.BlockSpec(shape, lambda i: (0, 0))

    out_t = pl.pallas_call(
        rbfn_kernel,
        out_shape=jax.ShapeDtypeStruct((n_out, n_pad), out_dtype),
        grid=grid,
        in_specs=[
            pl.BlockSpec((D, tn), lambda i: (0, i)),       # x^T: streamed over N
            const_spec((c_pad + n_out, D)),                # [2*beta*centers ; Wx] (resident)
            const_spec((c_pad, 1)),                        # beta*||c||^2          (resident)
            const_spec((c_pad, 1)),                        # beta                  (resident)
            const_spec((n_out, c_pad)),                    # Wr (bf16 by default)  (resident)
            const_spec((n_out, 1)),                        # bias                  (resident)
        ],
        out_specs=pl.BlockSpec((n_out, tn), lambda i: (0, i)),
        compiler_params=pltpu.CompilerParams(
            dimension_semantics=("parallel",),
            vmem_limit_bytes=vmem_limit,
        ),
        cost_estimate=cost,
    )(x_t, wcomb, bcsq, beta_col, wr, b_col)

    # (n_out, N) -> (N, n_out): tiny wrapper transpose, ~n_out*N elements of traffic.
    return out_t[:, :N].T


def rbfn_reference(x, centers, beta, w, b):
    diff = centers[None, :, :] - x[:, None, :]             # (N, C, D)
    sqdist = jnp.sum(diff * diff, axis=2)                  # (N, C)
    radial = jnp.exp(-beta * sqdist)                       # (N, C)
    feat = jnp.concatenate([x, radial], axis=1)            # (N, D + C)
    return feat @ w.T + b


if __name__ == "__main__":
    # small shapes consistent with the module's forward
    N, D, C, n_out = 8, 4, 16, 3

    key = jax.random.PRNGKey(0)
    k_x, k_c, k_w = jax.random.split(key, 3)

    # Scale inputs so several RBF activations are non-negligible under beta = 10,
    # making the numerical check actually exercise the radial path.
    x = 0.2 * jax.random.normal(k_x, (N, D), dtype=jnp.float32)
    centers = 0.2 * jax.random.normal(k_c, (C, D), dtype=jnp.float32)
    beta = jnp.ones((1, C), dtype=jnp.float32) * 10.0
    # nn.Linear per initialize_weights(): weight ~ N(0, 0.02), bias = 0
    w = 0.02 * jax.random.normal(k_w, (n_out, D + C), dtype=jnp.float32)
    b = jnp.zeros((n_out,), dtype=jnp.float32)

    out = jax.block_until_ready(rbfn_forward(x, centers, beta, w, b))

    ref = rbfn_reference(x, centers, beta, w, b)
    # radial @ Wr runs in bf16 (f32 accumulation); tolerances sized for bf16 rounding
    # of radial (in [0,1]) and Wr (~N(0, 0.02)) — structural errors would be >> this.
    np.testing.assert_allclose(np.asarray(out), np.asarray(ref), rtol=2e-2, atol=2e-3)
    assert out.shape == (N, n_out)

    print("KERNEL_OK")
</pallas_src>

<mosaic_0001>
module attributes {stable_mosaic.version = 11 : i64} {
  func.func @rbfn_kernel(%arg0: i32, %arg1: memref<4x128xf32, #tpu.memory_space<vmem>>, %arg2: memref<131x4xf32, #tpu.memory_space<vmem>>, %arg3: memref<128x1xf32, #tpu.memory_space<vmem>>, %arg4: memref<128x1xf32, #tpu.memory_space<vmem>>, %arg5: memref<3x128xbf16, #tpu.memory_space<vmem>>, %arg6: memref<3x1xf32, #tpu.memory_space<vmem>>, %arg7: memref<3x128xf32, #tpu.memory_space<vmem>>) attributes {dimension_semantics = [#tpu.dimension_semantics<parallel>], iteration_bounds = array<i64: 1>, scalar_prefetch = 0 : i64, scratch_operands = 0 : i64, tpu.core_type = #tpu.core_type<tc>, window_params = [{transform_indices = @transform_0, window_bounds = array<i64: 4, 128>}, {pipeline_mode = #tpu.pipeline_mode<synchronous>, transform_indices = @transform_1, window_bounds = array<i64: 131, 4>}, {pipeline_mode = #tpu.pipeline_mode<synchronous>, transform_indices = @transform_2, window_bounds = array<i64: 128, 1>}, {pipeline_mode = #tpu.pipeline_mode<synchronous>, transform_indices = @transform_3, window_bounds = array<i64: 128, 1>}, {pipeline_mode = #tpu.pipeline_mode<synchronous>, transform_indices = @transform_4, window_bounds = array<i64: 3, 128>}, {pipeline_mode = #tpu.pipeline_mode<synchronous>, transform_indices = @transform_5, window_bounds = array<i64: 3, 1>}, {transform_indices = @transform_6, window_bounds = array<i64: 3, 128>}]} {
    %c0 = arith.constant 0 : index
    %c0_0 = arith.constant 0 : index
    %0 = vector.load %arg1[%c0, %c0_0] : memref<4x128xf32, #tpu.memory_space<vmem>>, vector<4x128xf32>
    %c0_1 = arith.constant 0 : index
    %c0_2 = arith.constant 0 : index
    %1 = vector.load %arg2[%c0_1, %c0_2] : memref<131x4xf32, #tpu.memory_space<vmem>>, vector<131x4xf32>
    %cst = arith.constant dense<0.000000e+00> : vector<131x128xf32>
    %2 = tpu.matmul %1, %0, %cst {dimension_numbers = #tpu.dot_dimension_numbers<[1], [0], [0], [1], [0, 0, 1, 1], [], []>} : vector<131x4xf32>, vector<4x128xf32>, vector<131x128xf32> -> vector<131x128xf32>
    %3 = vector.extract_strided_slice %2 {offsets = [0, 0], sizes = [128, 128], strides = [1, 1]} : vector<131x128xf32> to vector<128x128xf32>
    %4 = vector.extract_strided_slice %2 {offsets = [128, 0], sizes = [3, 128], strides = [1, 1]} : vector<131x128xf32> to vector<3x128xf32>
    %5 = arith.mulf %0, %0 : vector<4x128xf32>
    %cst_3 = arith.constant dense<0.000000e+00> : vector<128xf32>
    %6 = vector.multi_reduction <add>, %5, %cst_3 [0] : vector<4x128xf32> to vector<128xf32>
    %7 = vector.shape_cast %6 : vector<128xf32> to vector<1x128xf32>
    %c0_4 = arith.constant 0 : index
    %c0_5 = arith.constant 0 : index
    %8 = vector.load %arg4[%c0_4, %c0_5] : memref<128x1xf32, #tpu.memory_space<vmem>>, vector<128x1xf32>
    %9 = vector.broadcast %8 : vector<128x1xf32> to vector<128x128xf32>
    %10 = vector.broadcast %7 : vector<1x128xf32> to vector<128x128xf32>
    %11 = arith.mulf %9, %10 : vector<128x128xf32>
    %c0_6 = arith.constant 0 : index
    %c0_7 = arith.constant 0 : index
    %12 = vector.load %arg3[%c0_6, %c0_7] : memref<128x1xf32, #tpu.memory_space<vmem>>, vector<128x1xf32>
    %13 = vector.broadcast %12 : vector<128x1xf32> to vector<128x128xf32>
    %14 = arith.addf %11, %13 : vector<128x128xf32>
    %15 = arith.subf %14, %3 : vector<128x128xf32>
    %cst_8 = arith.constant 0.000000e+00 : f32
    %16 = vector.broadcast %cst_8 : f32 to vector<128x128xf32>
    %17 = arith.maximumf %15, %16 : vector<128x128xf32>
    %cst_9 = arith.constant 0.000000e+00 : f32
    %18 = vector.broadcast %cst_9 : f32 to vector<128x128xf32>
    %19 = arith.subf %18, %17 : vector<128x128xf32>
    %20 = math.exp %19 : vector<128x128xf32>
    %c0_10 = arith.constant 0 : index
    %c0_11 = arith.constant 0 : index
    %21 = vector.load %arg5[%c0_10, %c0_11] : memref<3x128xbf16, #tpu.memory_space<vmem>>, vector<3x128xbf16>
    %22 = arith.truncf %20 : vector<128x128xf32> to vector<128x128xbf16>
    %cst_12 = arith.constant dense<0.000000e+00> : vector<3x128xf32>
    %23 = tpu.matmul %21, %22, %cst_12 {dimension_numbers = #tpu.dot_dimension_numbers<[1], [0], [0], [1], [0, 0, 1, 1], [], []>} : vector<3x128xbf16>, vector<128x128xbf16>, vector<3x128xf32> -> vector<3x128xf32>
    %24 = arith.addf %23, %4 : vector<3x128xf32>
    %c0_13 = arith.constant 0 : index
    %c0_14 = arith.constant 0 : index
    %25 = vector.load %arg6[%c0_13, %c0_14] : memref<3x1xf32, #tpu.memory_space<vmem>>, vector<3x1xf32>
    %26 = vector.broadcast %25 : vector<3x1xf32> to vector<3x128xf32>
    %27 = arith.addf %24, %26 : vector<3x128xf32>
    %c0_15 = arith.constant 0 : index
    %c0_16 = arith.constant 0 : index
    %28 = vector.load %arg7[%c0_15, %c0_16] : memref<3x128xf32, #tpu.memory_space<vmem>>, vector<3x128xf32>
    tpu.vector_store %arg7[%c0_15, %c0_16], %27 {strides = array<i32>} : memref<3x128xf32, #tpu.memory_space<vmem>>, vector<3x128xf32>,
    return
  }
  func.func @transform_0(%arg0: i32) -> (i32, i32) {
    %c0_i32 = arith.constant 0 : i32
    %c0_i32_0 = arith.constant 0 : i32
    return %c0_i32, %arg0 : i32, i32
  }
  func.func @transform_1(%arg0: i32) -> (i32, i32) {
    %c0_i32 = arith.constant 0 : i32
    %c0_i32_0 = arith.constant 0 : i32
    %c0_i32_1 = arith.constant 0 : i32
    return %c0_i32, %c0_i32_0 : i32, i32
  }
  func.func @transform_2(%arg0: i32) -> (i32, i32) {
    %c0_i32 = arith.constant 0 : i32
    %c0_i32_0 = arith.constant 0 : i32
    %c0_i32_1 = arith.constant 0 : i32
    return %c0_i32, %c0_i32_0 : i32, i32
  }
  func.func @transform_3(%arg0: i32) -> (i32, i32) {
    %c0_i32 = arith.constant 0 : i32
    %c0_i32_0 = arith.constant 0 : i32
    %c0_i32_1 = arith.constant 0 : i32
    return %c0_i32, %c0_i32_0 : i32, i32
  }
  func.func @transform_4(%arg0: i32) -> (i32, i32) {
    %c0_i32 = arith.constant 0 : i32
    %c0_i32_0 = arith.constant 0 : i32
    %c0_i32_1 = arith.constant 0 : i32
    return %c0_i32, %c0_i32_0 : i32, i32
  }
  func.func @transform_5(%arg0: i32) -> (i32, i32) {
    %c0_i32 = arith.constant 0 : i32
    %c0_i32_0 = arith.constant 0 : i32
    %c0_i32_1 = arith.constant 0 : i32
    return %c0_i32, %c0_i32_0 : i32, i32
  }
  func.func @transform_6(%arg0: i32) -> (i32, i32) {
    %c0_i32 = arith.constant 0 : i32
    %c0_i32_0 = arith.constant 0 : i32
    return %c0_i32, %arg0 : i32, i32
  }
}

</mosaic_0001>

<llo_original>
// kernel: tpu_custom_call.1
$region0: #{tpu_custom_call.1}
  #allocation0 [shape = 'u32[]', space=smem, size = 0x4, offset = 0x4, fixed_abs, tag = 'smem constant byte address 0x4 - core index']
  #allocation1 [shape = 'u32[144,128]{1,0:T(1,128)}', space=vmem, size = 0x12000, scoped, tag = 'internal scratch']
  %s0 = inlined_call_operand.vmem [shape: f32[4,128], index: 0, kind: input, shape index: {}]
  %s1 = inlined_call_operand.vmem [shape: f32[131,4], index: 1, kind: input, shape index: {}]
  %s2 = inlined_call_operand.vmem [shape: f32[128,1], index: 2, kind: input, shape index: {}]
  %s3 = inlined_call_operand.vmem [shape: f32[128,1], index: 3, kind: input, shape index: {}]
  %s4 = inlined_call_operand.vmem [shape: bf16[3,128], index: 4, kind: input, shape index: {}]
  %s5 = inlined_call_operand.vmem [shape: f32[3,1], index: 5, kind: input, shape index: {}]
  %s6 = inlined_call_operand.hbm [shape: f32[3,128], index: 6, kind: output, shape index: {}]
  %s7 = sld [smem:[#allocation0]]
  $region34: #{tpu_custom_call.1} parent=0
    _
  %s9 = ssub.s32 1, %s7
  %s10 = scalar_select 0, %s9, %s7
  $region1: #{tpu_custom_call.1} parent=0
    #allocation2 [shape = 'u8[2048]{0}', space=vmem, size = 0x800, scoped, tag = 'output window, operand 0, single buffered']
    #allocation3 [shape = 's32[1]{0}', space=sflag, size = 0x4, scoped, tag = 'scoped memory for tpu_custom_call.1']
    %11 = vsyncpa [#allocation3], 0
    // Predicated region
    $region2: #{tpu_custom_call.1} parent=1 // pred_check
      _
    $region3: #{tpu_custom_call.1} parent=1 // pred_check_branch
      %13 = sbr.rel (0) target = $region5
    $region4: #{tpu_custom_call.1} parent=1 // pred_region
      _
    $region5: #{tpu_custom_call.1} parent=1 // pred_fallthru
      _
    // Predicated region
    $region6: #{tpu_custom_call.1} parent=1 // pred_check
      _
    $region7: #{tpu_custom_call.1} parent=1 // pred_check_branch
      %15 = sbr.rel (0) target = $region9
    $region8: #{tpu_custom_call.1} parent=1 // pred_region
      _
    $region9: #{tpu_custom_call.1} parent=1 // pred_fallthru
      _
    // Predicated region
    $region10: #{tpu_custom_call.1} parent=1 // pred_check
      _
    $region11: #{tpu_custom_call.1} parent=1 // pred_check_branch
      %17 = sbr.rel (0) target = $region13
    $region12: #{tpu_custom_call.1} parent=1 // pred_region
      _
    $region13: #{tpu_custom_call.1} parent=1 // pred_fallthru
      _
    // Predicated region
    $region14: #{tpu_custom_call.1} parent=1 // pred_check
      _
    $region15: #{tpu_custom_call.1} parent=1 // pred_check_branch
      %19 = sbr.rel (0) target = $region17
    $region16: #{tpu_custom_call.1} parent=1 // pred_region
      _
    $region17: #{tpu_custom_call.1} parent=1 // pred_fallthru
      _
    // Predicated region
    $region18: #{tpu_custom_call.1} parent=1 // pred_check
      _
    $region19: #{tpu_custom_call.1} parent=1 // pred_check_branch
      %21 = sbr.rel (0) target = $region21
    $region20: #{tpu_custom_call.1} parent=1 // pred_region
      _
    $region21: #{tpu_custom_call.1} parent=1 // pred_fallthru
      _
    // Predicated region
    $region22: #{tpu_custom_call.1} parent=1 // pred_check
      _
    $region23: #{tpu_custom_call.1} parent=1 // pred_check_branch
      %23 = sbr.rel (0) target = $region25
    $region24: #{tpu_custom_call.1} parent=1 // pred_region
      _
    $region25: #{tpu_custom_call.1} parent=1 // pred_fallthru
      _
    %v25 = vld [vmem:[%s0] sm:$0xf]
    %v26 = vld [vmem:[%s1] sm:$0xff]
    %v27 = vld [vmem:[%s1 + $0x8] sm:$0xff]
    %v28 = vld [vmem:[%s1 + $0x10] sm:$0xff]
    %v29 = vld [vmem:[%s1 + $0x18] sm:$0xff]
    %v30 = vld [vmem:[%s1 + $0x20] sm:$0xff]
    %v31 = vld [vmem:[%s1 + $0x28] sm:$0xff]
    %v32 = vld [vmem:[%s1 + $0x30] sm:$0xff]
    %v33 = vld [vmem:[%s1 + $0x38] sm:$0xff]
    %v34 = vld [vmem:[%s1 + $0x40] sm:$0xff]
    %v35 = vld [vmem:[%s1 + $0x48] sm:$0xff]
    %v36 = vld [vmem:[%s1 + $0x50] sm:$0xff]
    %v37 = vld [vmem:[%s1 + $0x58] sm:$0xff]
    %v38 = vld [vmem:[%s1 + $0x60] sm:$0xff]
    %v39 = vld [vmem:[%s1 + $0x68] sm:$0xff]
    %v40 = vld [vmem:[%s1 + $0x70] sm:$0xff]
    %v41 = vld [vmem:[%s1 + $0x78] sm:$0xff]
    %v42 = vld [vmem:[%s1 + $0x80] sm:$0x7]
    %vm43 = vcmask 31744
    %v45 = vsel %vm43, %v26, 0
    %v48 = vsel %vm43, %v27, 0
    %v51 = vsel %vm43, %v28, 0
    %v54 = vsel %vm43, %v29, 0
    %v57 = vsel %vm43, %v30, 0
    %v60 = vsel %vm43, %v31, 0
    %v63 = vsel %vm43, %v32, 0
    %v66 = vsel %vm43, %v33, 0
    %v69 = vsel %vm43, %v34, 0
    %v72 = vsel %vm43, %v35, 0
    %v75 = vsel %vm43, %v36, 0
    %v78 = vsel %vm43, %v37, 0
    %v81 = vsel %vm43, %v38, 0
    %v84 = vsel %vm43, %v39, 0
    %v87 = vsel %vm43, %v40, 0
    %v90 = vsel %vm43, %v41, 0
    %v93 = vsel %vm43, %v42, 0
    %vm95 = vcmask 1043456
    %v97 = vsel %vm95, %v25, 0
    %99 = vmatprep.subr.mxu0 0.0
    %100 = vmatpush1.msra.mxu0 %v97
    %101 = vmatprep.subr.mxu0 0.0
    %102 = vmatpush1.msra.mxu0 0.0
    %103 = vmatprep.subr.mxu0 0.0
    %104 = vmatpush1.msra.mxu0 0.0
    %105 = vmatprep.subr.mxu0 0.0
    %106 = vmatpush1.msra.mxu0 0.0
    %107 = vmatprep.subr.mxu0 0.0
    %108 = vmatpush1.msra.mxu0 0.0
    %109 = vmatprep.subr.mxu0 0.0
    %110 = vmatpush1.msra.mxu0 0.0
    %111 = vmatprep.subr.mxu0 0.0
    %112 = vmatpush1.msra.mxu0 0.0
    %113 = vmatprep.subr.mxu0 0.0
    %114 = vmatpush1.msra.mxu0 0.0
    %115 = vmatprep.subr.mxu0 0.0
    %116 = vmatpush1.msra.mxu0 0.0
    %117 = vmatprep.subr.mxu0 0.0
    %118 = vmatpush1.msra.mxu0 0.0
    %119 = vmatprep.subr.mxu0 0.0
    %120 = vmatpush1.msra.mxu0 0.0
    %121 = vmatprep.subr.mxu0 0.0
    %122 = vmatpush1.msra.mxu0 0.0
    %123 = vmatprep.subr.mxu0 0.0
    %124 = vmatpush1.msra.mxu0 0.0
    %125 = vmatprep.subr.mxu0 0.0
    %126 = vmatpush1.msra.mxu0 0.0
    %127 = vmatprep.subr.mxu0 0.0
    %128 = vmatpush1.msra.mxu0 0.0
    %129 = vmatprep.subr.mxu0 0.0
    %130 = vmatpush1.msra.mxu0 0.0
    %131 = vmatprep.subr.mxu0 0.0
    %132 = vmatpush1.msra.mxu0 0.0
    %133 = vmatprep.subr.mxu0 0.0
    %134 = vmatpush1.msra.mxu0 0.0
    %135 = vmatprep.subr.mxu0 0.0
    %136 = vmatpush1.msra.mxu0 0.0
    %137 = vmatprep.subr.mxu0 0.0
    %138 = vmatpush1.msra.mxu0 0.0
    %139 = vmatprep.subr.mxu0 0.0
    %140 = vmatpush1.msra.mxu0 0.0
    %141 = vmatprep.subr.mxu0 0.0
    %142 = vmatpush1.msra.mxu0 0.0
    %143 = vmatprep.subr.mxu0 0.0
    %144 = vmatpush1.msra.mxu0 0.0
    %145 = vmatprep.subr.mxu0 0.0
    %146 = vmatpush1.msra.mxu0 0.0
    %147 = vmatprep.subr.mxu0 0.0
    %148 = vmatpush1.msra.mxu0 0.0
    %149 = vmatprep.subr.mxu0 0.0
    %150 = vmatpush1.msra.mxu0 0.0
    %151 = vmatprep.subr.mxu0 0.0
    %152 = vmatpush1.msra.mxu0 0.0
    %153 = vmatprep.subr.mxu0 0.0
    %154 = vmatpush1.msra.mxu0 0.0
    %155 = vmatprep.subr.mxu0 0.0
    %156 = vmatpush1.msra.mxu0 0.0
    %157 = vmatprep.subr.mxu0 0.0
    %158 = vmatpush1.msra.mxu0 0.0
    %159 = vmatprep.subr.mxu0 0.0
    %160 = vmatpush1.msra.mxu0 0.0
    %161 = vmatprep.subr.mxu0 0.0
    %162 = vmatpush1.msra.mxu0 0.0
    %163 = vmatprep.mubr.f32.mxu0 0.0
    %164 = vmatmul.mubr.f32.gmra.mrb[0].mxu0 %v45
    %v165 = vpop.f32.mrb[0].mxu0
    %v166 = vadd.f32 0.0, %v165
    %v167 = vpop.f32.mrb[0].mxu0
    %168 = vmatprep.mubr.f32.mxu0 0.0
    %169 = vmatmul.mubr.f32.gmra.mrb[0].mxu0 %v48
    %v170 = vpop.f32.mrb[0].mxu0
    %v171 = vadd.f32 0.0, %v170
    %v172 = vpop.f32.mrb[0].mxu0
    %173 = vmatprep.mubr.f32.mxu0 0.0
    %174 = vmatmul.mubr.f32.gmra.mrb[0].mxu0 %v51
    %v175 = vpop.f32.mrb[0].mxu0
    %v176 = vadd.f32 0.0, %v175
    %v177 = vpop.f32.mrb[0].mxu0
    %178 = vmatprep.mubr.f32.mxu0 0.0
    %179 = vmatmul.mubr.f32.gmra.mrb[0].mxu0 %v54
    %v180 = vpop.f32.mrb[0].mxu0
    %v181 = vadd.f32 0.0, %v180
    %v182 = vpop.f32.mrb[0].mxu0
    %183 = vmatprep.mubr.f32.mxu0 0.0
    %184 = vmatmul.mubr.f32.gmra.mrb[0].mxu0 %v57
    %v185 = vpop.f32.mrb[0].mxu0
    %v186 = vadd.f32 0.0, %v185
    %v187 = vpop.f32.mrb[0].mxu0
    %188 = vmatprep.mubr.f32.mxu0 0.0
    %189 = vmatmul.mubr.f32.gmra.mrb[0].mxu0 %v60
    %v190 = vpop.f32.mrb[0].mxu0
    %v191 = vadd.f32 0.0, %v190
    %v192 = vpop.f32.mrb[0].mxu0
    %193 = vmatprep.mubr.f32.mxu0 0.0
    %194 = vmatmul.mubr.f32.gmra.mrb[0].mxu0 %v63
    %v195 = vpop.f32.mrb[0].mxu0
    %v196 = vadd.f32 0.0, %v195
    %v197 = vpop.f32.mrb[0].mxu0
    %198 = vmatprep.mubr.f32.mxu0 0.0
    %199 = vmatmul.mubr.f32.gmra.mrb[0].mxu0 %v66
    %v200 = vpop.f32.mrb[0].mxu0
    %v201 = vadd.f32 0.0, %v200
    %v202 = vpop.f32.mrb[0].mxu0
    %203 = vmatprep.mubr.f32.mxu0 0.0
    %204 = vmatmul.mubr.f32.gmra.mrb[0].mxu0 %v69
    %v205 = vpop.f32.mrb[0].mxu0
    %v206 = vadd.f32 0.0, %v205
    %v207 = vpop.f32.mrb[0].mxu0
    %208 = vmatprep.mubr.f32.mxu0 0.0
    %209 = vmatmul.mubr.f32.gmra.mrb[0].mxu0 %v72
    %v210 = vpop.f32.mrb[0].mxu0
    %v211 = vadd.f32 0.0, %v210
    %v212 = vpop.f32.mrb[0].mxu0
    %213 = vmatprep.mubr.f32.mxu0 0.0
    %214 = vmatmul.mubr.f32.gmra.mrb[0].mxu0 %v75
    %v215 = vpop.f32.mrb[0].mxu0
    %v216 = vadd.f32 0.0, %v215
    %v217 = vpop.f32.mrb[0].mxu0
    %218 = vmatprep.mubr.f32.mxu0 0.0
    %219 = vmatmul.mubr.f32.gmra.mrb[0].mxu0 %v78
    %v220 = vpop.f32.mrb[0].mxu0
    %v221 = vadd.f32 0.0, %v220
    %v222 = vpop.f32.mrb[0].mxu0
    %223 = vmatprep.mubr.f32.mxu0 0.0
    %224 = vmatmul.mubr.f32.gmra.mrb[0].mxu0 %v81
    %v225 = vpop.f32.mrb[0].mxu0
    %v226 = vadd.f32 0.0, %v225
    %v227 = vpop.f32.mrb[0].mxu0
    %228 = vmatprep.mubr.f32.mxu0 0.0
    %229 = vmatmul.mubr.f32.gmra.mrb[0].mxu0 %v84
    %v230 = vpop.f32.mrb[0].mxu0
    %v231 = vadd.f32 0.0, %v230
    %v232 = vpop.f32.mrb[0].mxu0
    %233 = vmatprep.mubr.f32.mxu0 0.0
    %234 = vmatmul.mubr.f32.gmra.mrb[0].mxu0 %v87
    %v235 = vpop.f32.mrb[0].mxu0
    %v236 = vadd.f32 0.0, %v235
    %v237 = vpop.f32.mrb[0].mxu0
    %238 = vmatprep.mubr.f32.mxu0 0.0
    %239 = vmatmul.mubr.f32.gmra.mrb[0].mxu0 %v90
    %v240 = vpop.f32.mrb[0].mxu0
    %v241 = vadd.f32 0.0, %v240
    %v242 = vpop.f32.mrb[0].mxu0
    %243 = vmatprep.mubr.f32.mxu0 0.0
    %244 = vmatmul.mubr.f32.gmra.mrb[0].mxu0 %v93
    %v245 = vpop.f32.mrb[0].mxu0
    %v246 = vadd.f32 0.0, %v245
    %v247 = vpop.f32.mrb[0].mxu0
    %248 = vdwg.mxu0
    %v249 = vmul.f32 %v25, %v25
    %v250 = vsel %vm95, %v249, 0.0
    %v251 = vrot.slane %v250, 4
    %v252 = vadd.f32 %v250, %v251
    %v253 = vrot.slane %v252, 2
    %v254 = vadd.f32 %v252, %v253
    %v255 = vrot.slane %v254, 1
    %v256 = vadd.f32 %v254, %v255
    %v257 = vld [vmem:[%s3] sm:$0xff]
    %v258 = vld [vmem:[%s3 + $0x8] sm:$0xff]
    %v259 = vld [vmem:[%s3 + $0x10] sm:$0xff]
    %v260 = vld [vmem:[%s3 + $0x18] sm:$0xff]
    %v261 = vld [vmem:[%s3 + $0x20] sm:$0xff]
    %v262 = vld [vmem:[%s3 + $0x28] sm:$0xff]
    %v263 = vld [vmem:[%s3 + $0x30] sm:$0xff]
    %v264 = vld [vmem:[%s3 + $0x38] sm:$0xff]
    %v265 = vld [vmem:[%s3 + $0x40] sm:$0xff]
    %v266 = vld [vmem:[%s3 + $0x48] sm:$0xff]
    %v267 = vld [vmem:[%s3 + $0x50] sm:$0xff]
    %v268 = vld [vmem:[%s3 + $0x58] sm:$0xff]
    %v269 = vld [vmem:[%s3 + $0x60] sm:$0xff]
    %v270 = vld [vmem:[%s3 + $0x68] sm:$0xff]
    %v271 = vld [vmem:[%s3 + $0x70] sm:$0xff]
    %v272 = vld [vmem:[%s3 + $0x78] sm:$0xff]
    %274 = vset.pattern.permute.xlu0 0
    %275 = vperm.xlu0 %274, %v257
    %v276 = vpop.permute.xlu0 %275
    %279 = vset.pattern.permute.xlu0 0
    %280 = vperm.xlu0 %279, %v258
    %v281 = vpop.permute.xlu0 %280
    %284 = vset.pattern.permute.xlu0 0
    %285 = vperm.xlu0 %284, %v259
    %v286 = vpop.permute.xlu0 %285
    %289 = vset.pattern.permute.xlu0 0
    %290 = vperm.xlu0 %289, %v260
    %v291 = vpop.permute.xlu0 %290
    %294 = vset.pattern.permute.xlu0 0
    %295 = vperm.xlu0 %294, %v261
    %v296 = vpop.permute.xlu0 %295
    %299 = vset.pattern.permute.xlu0 0
    %300 = vperm.xlu0 %299, %v262
    %v301 = vpop.permute.xlu0 %300
    %304 = vset.pattern.permute.xlu0 0
    %305 = vperm.xlu0 %304, %v263
    %v306 = vpop.permute.xlu0 %305
    %309 = vset.pattern.permute.xlu0 0
    %310 = vperm.xlu0 %309, %v264
    %v311 = vpop.permute.xlu0 %310
    %314 = vset.pattern.permute.xlu0 0
    %315 = vperm.xlu0 %314, %v265
    %v316 = vpop.permute.xlu0 %315
    %319 = vset.pattern.permute.xlu0 0
    %320 = vperm.xlu0 %319, %v266
    %v321 = vpop.permute.xlu0 %320
    %324 = vset.pattern.permute.xlu0 0
    %325 = vperm.xlu0 %324, %v267
    %v326 = vpop.permute.xlu0 %325
    %329 = vset.pattern.permute.xlu0 0
    %330 = vperm.xlu0 %329, %v268
    %v331 = vpop.permute.xlu0 %330
    %334 = vset.pattern.permute.xlu0 0
    %335 = vperm.xlu0 %334, %v269
    %v336 = vpop.permute.xlu0 %335
    %339 = vset.pattern.permute.xlu0 0
    %340 = vperm.xlu0 %339, %v270
    %v341 = vpop.permute.xlu0 %340
    %344 = vset.pattern.permute.xlu0 0
    %345 = vperm.xlu0 %344, %v271
    %v346 = vpop.permute.xlu0 %345
    %349 = vset.pattern.permute.xlu0 0
    %350 = vperm.xlu0 %349, %v272
    %v351 = vpop.permute.xlu0 %350
    %v353 = vmul.f32 %v276, %v256
    %v354 = vmul.f32 %v281, %v256
    %v355 = vmul.f32 %v286, %v256
    %v356 = vmul.f32 %v291, %v256
    %v357 = vmul.f32 %v296, %v256
    %v358 = vmul.f32 %v301, %v256
    %v359 = vmul.f32 %v306, %v256
    %v360 = vmul.f32 %v311, %v256
    %v361 = vmul.f32 %v316, %v256
    %v362 = vmul.f32 %v321, %v256
    %v363 = vmul.f32 %v326, %v256
    %v364 = vmul.f32 %v331, %v256
    %v365 = vmul.f32 %v336, %v256
    %v366 = vmul.f32 %v341, %v256
    %v367 = vmul.f32 %v346, %v256
    %v368 = vmul.f32 %v351, %v256
    %v369 = vld [vmem:[%s2] sm:$0xff]
    %v370 = vld [vmem:[%s2 + $0x8] sm:$0xff]
    %v371 = vld [vmem:[%s2 + $0x10] sm:$0xff]
    %v372 = vld [vmem:[%s2 + $0x18] sm:$0xff]
    %v373 = vld [vmem:[%s2 + $0x20] sm:$0xff]
    %v374 = vld [vmem:[%s2 + $0x28] sm:$0xff]
    %v375 = vld [vmem:[%s2 + $0x30] sm:$0xff]
    %v376 = vld [vmem:[%s2 + $0x38] sm:$0xff]
    %v377 = vld [vmem:[%s2 + $0x40] sm:$0xff]
    %v378 = vld [vmem:[%s2 + $0x48] sm:$0xff]
    %v379 = vld [vmem:[%s2 + $0x50] sm:$0xff]
    %v380 = vld [vmem:[%s2 + $0x58] sm:$0xff]
    %v381 = vld [vmem:[%s2 + $0x60] sm:$0xff]
    %v382 = vld [vmem:[%s2 + $0x68] sm:$0xff]
    %v383 = vld [vmem:[%s2 + $0x70] sm:$0xff]
    %v384 = vld [vmem:[%s2 + $0x78] sm:$0xff]
    %386 = vset.pattern.permute.xlu0 0
    %387 = vperm.xlu0 %386, %v369
    %v388 = vpop.permute.xlu0 %387
    %391 = vset.pattern.permute.xlu0 0
    %392 = vperm.xlu0 %391, %v370
    %v393 = vpop.permute.xlu0 %392
    %396 = vset.pattern.permute.xlu0 0
    %397 = vperm.xlu0 %396, %v371
    %v398 = vpop.permute.xlu0 %397
    %401 = vset.pattern.permute.xlu0 0
    %402 = vperm.xlu0 %401, %v372
    %v403 = vpop.permute.xlu0 %402
    %406 = vset.pattern.permute.xlu0 0
    %407 = vperm.xlu0 %406, %v373
    %v408 = vpop.permute.xlu0 %407
    %411 = vset.pattern.permute.xlu0 0
    %412 = vperm.xlu0 %411, %v374
    %v413 = vpop.permute.xlu0 %412
    %416 = vset.pattern.permute.xlu0 0
    %417 = vperm.xlu0 %416, %v375
    %v418 = vpop.permute.xlu0 %417
    %421 = vset.pattern.permute.xlu0 0
    %422 = vperm.xlu0 %421, %v376
    %v423 = vpop.permute.xlu0 %422
    %426 = vset.pattern.permute.xlu0 0
    %427 = vperm.xlu0 %426, %v377
    %v428 = vpop.permute.xlu0 %427
    %431 = vset.pattern.permute.xlu0 0
    %432 = vperm.xlu0 %431, %v378
    %v433 = vpop.permute.xlu0 %432
    %436 = vset.pattern.permute.xlu0 0
    %437 = vperm.xlu0 %436, %v379
    %v438 = vpop.permute.xlu0 %437
    %441 = vset.pattern.permute.xlu0 0
    %442 = vperm.xlu0 %441, %v380
    %v443 = vpop.permute.xlu0 %442
    %446 = vset.pattern.permute.xlu0 0
    %447 = vperm.xlu0 %446, %v381
    %v448 = vpop.permute.xlu0 %447
    %451 = vset.pattern.permute.xlu0 0
    %452 = vperm.xlu0 %451, %v382
    %v453 = vpop.permute.xlu0 %452
    %456 = vset.pattern.permute.xlu0 0
    %457 = vperm.xlu0 %456, %v383
    %v458 = vpop.permute.xlu0 %457
    %461 = vset.pattern.permute.xlu0 0
    %462 = vperm.xlu0 %461, %v384
    %v463 = vpop.permute.xlu0 %462
    %v465 = vadd.f32 %v353, %v388
    %v466 = vadd.f32 %v354, %v393
    %v467 = vadd.f32 %v355, %v398
    %v468 = vadd.f32 %v356, %v403
    %v469 = vadd.f32 %v357, %v408
    %v470 = vadd.f32 %v358, %v413
    %v471 = vadd.f32 %v359, %v418
    %v472 = vadd.f32 %v360, %v423
    %v473 = vadd.f32 %v361, %v428
    %v474 = vadd.f32 %v362, %v433
    %v475 = vadd.f32 %v363, %v438
    %v476 = vadd.f32 %v364, %v443
    %v477 = vadd.f32 %v365, %v448
    %v478 = vadd.f32 %v366, %v453
    %v479 = vadd.f32 %v367, %v458
    %v480 = vadd.f32 %v368, %v463
    %v481 = vsub.f32 %v465, %v166
    %v482 = vsub.f32 %v466, %v171
    %v483 = vsub.f32 %v467, %v176
    %v484 = vsub.f32 %v468, %v181
    %v485 = vsub.f32 %v469, %v186
    %v486 = vsub.f32 %v470, %v191
    %v487 = vsub.f32 %v471, %v196
    %v488 = vsub.f32 %v472, %v201
    %v489 = vsub.f32 %v473, %v206
    %v490 = vsub.f32 %v474, %v211
    %v491 = vsub.f32 %v475, %v216
    %v492 = vsub.f32 %v476, %v221
    %v493 = vsub.f32 %v477, %v226
    %v494 = vsub.f32 %v478, %v231
    %v495 = vsub.f32 %v479, %v236
    %v496 = vsub.f32 %v480, %v241
    %v497 = vmax.f32 %v481, 0.0
    %v498 = vmax.f32 %v482, 0.0
    %v499 = vmax.f32 %v483, 0.0
    %v500 = vmax.f32 %v484, 0.0
    %v501 = vmax.f32 %v485, 0.0
    %v502 = vmax.f32 %v486, 0.0
    %v503 = vmax.f32 %v487, 0.0
    %v504 = vmax.f32 %v488, 0.0
    %v505 = vmax.f32 %v489, 0.0
    %v506 = vmax.f32 %v490, 0.0
    %v507 = vmax.f32 %v491, 0.0
    %v508 = vmax.f32 %v492, 0.0
    %v509 = vmax.f32 %v493, 0.0
    %v510 = vmax.f32 %v494, 0.0
    %v511 = vmax.f32 %v495, 0.0
    %v512 = vmax.f32 %v496, 0.0
    %v513 = vsub.f32 0.0, %v497
    %v514 = vsub.f32 0.0, %v498
    %v515 = vsub.f32 0.0, %v499
    %v516 = vsub.f32 0.0, %v500
    %v517 = vsub.f32 0.0, %v501
    %v518 = vsub.f32 0.0, %v502
    %v519 = vsub.f32 0.0, %v503
    %v520 = vsub.f32 0.0, %v504
    %v521 = vsub.f32 0.0, %v505
    %v522 = vsub.f32 0.0, %v506
    %v523 = vsub.f32 0.0, %v507
    %v524 = vsub.f32 0.0, %v508
    %v525 = vsub.f32 0.0, %v509
    %v526 = vsub.f32 0.0, %v510
    %v527 = vsub.f32 0.0, %v511
    %v528 = vsub.f32 0.0, %v512
    %v529 = vmul.f32 %v513, 1.442695
    %v530 = vpow.pop %v529
    %v531 = vmul.f32 %v514, 1.442695
    %v532 = vpow.pop %v531
    %v533 = vmul.f32 %v515, 1.442695
    %v534 = vpow.pop %v533
    %v535 = vmul.f32 %v516, 1.442695
    %v536 = vpow.pop %v535
    %v537 = vmul.f32 %v517, 1.442695
    %v538 = vpow.pop %v537
    %v539 = vmul.f32 %v518, 1.442695
    %v540 = vpow.pop %v539
    %v541 = vmul.f32 %v519, 1.442695
    %v542 = vpow.pop %v541
    %v543 = vmul.f32 %v520, 1.442695
    %v544 = vpow.pop %v543
    %v545 = vmul.f32 %v521, 1.442695
    %v546 = vpow.pop %v545
    %v547 = vmul.f32 %v522, 1.442695
    %v548 = vpow.pop %v547
    %v549 = vmul.f32 %v523, 1.442695
    %v550 = vpow.pop %v549
    %v551 = vmul.f32 %v524, 1.442695
    %v552 = vpow.pop %v551
    %v553 = vmul.f32 %v525, 1.442695
    %v554 = vpow.pop %v553
    %v555 = vmul.f32 %v526, 1.442695
    %v556 = vpow.pop %v555
    %v557 = vmul.f32 %v527, 1.442695
    %v558 = vpow.pop %v557
    %v559 = vmul.f32 %v528, 1.442695
    %v560 = vpow.pop %v559
    %v561 = vld [vmem:[%s4] sm:$0x3]
    %v562 = vpack.c.bf16 %v532, %v530
    %v563 = vpack.c.bf16 %v536, %v534
    %v564 = vpack.c.bf16 %v540, %v538
    %v565 = vpack.c.bf16 %v544, %v542
    %v566 = vpack.c.bf16 %v548, %v546
    %v567 = vpack.c.bf16 %v552, %v550
    %v568 = vpack.c.bf16 %v556, %v554
    %v569 = vpack.c.bf16 %v560, %v558
    %570 = vmatprep.subr.bf16.mxu0 0
    %571 = vmatpush1.bf16.msra.mxu0 %v562
    %572 = vmatprep.subr.bf16.mxu0 0
    %573 = vmatpush1.bf16.msra.mxu0 %v563
    %574 = vmatprep.subr.bf16.mxu0 0
    %575 = vmatpush1.bf16.msra.mxu0 %v564
    %576 = vmatprep.subr.bf16.mxu0 0
    %577 = vmatpush1.bf16.msra.mxu0 %v565
    %578 = vmatprep.subr.bf16.mxu0 0
    %579 = vmatpush1.bf16.msra.mxu0 %v566
    %580 = vmatprep.subr.bf16.mxu0 0
    %581 = vmatpush1.bf16.msra.mxu0 %v567
    %582 = vmatprep.subr.bf16.mxu0 0
    %583 = vmatpush1.bf16.msra.mxu0 %v568
    %584 = vmatprep.subr.bf16.mxu0 0
    %585 = vmatpush1.bf16.msra.mxu0 %v569
    %586 = vmatprep.subr.bf16.mxu0 0
    %587 = vmatpush1.bf16.msra.mxu0 0
    %588 = vmatprep.subr.bf16.mxu0 0
    %589 = vmatpush1.bf16.msra.mxu0 0
    %590 = vmatprep.subr.bf16.mxu0 0
    %591 = vmatpush1.bf16.msra.mxu0 0
    %592 = vmatprep.subr.bf16.mxu0 0
    %593 = vmatpush1.bf16.msra.mxu0 0
    %594 = vmatprep.subr.bf16.mxu0 0
    %595 = vmatpush1.bf16.msra.mxu0 0
    %596 = vmatprep.subr.bf16.mxu0 0
    %597 = vmatpush1.bf16.msra.mxu0 0
    %598 = vmatprep.subr.bf16.mxu0 0
    %599 = vmatpush1.bf16.msra.mxu0 0
    %600 = vmatprep.subr.bf16.mxu0 0
    %601 = vmatpush1.bf16.msra.mxu0 0
    %602 = vmatprep.mubr.bf16.mxu0 0
    %603 = vmatmul.mubr.bf16.gmra.mrb[0].mxu0 %v561
    %v604 = vpop.f32.mrb[0].mxu0
    %v605 = vadd.f32 %v246, %v604
    %v606 = vpop.f32.mrb[0].mxu0
    %v607 = vpop.f32.mrb[0].mxu0
    %v608 = vpop.f32.mrb[0].mxu0
    %609 = vdwg.mxu0
    %v610 = vld [vmem:[%s5] sm:$0x7]
    %612 = vset.pattern.permute.xlu0 0
    %613 = vperm.xlu0 %612, %v610
    %v614 = vpop.permute.xlu0 %613
    %v616 = vadd.f32 %v605, %v614
    %617 = vst [vmem:[#allocation2] sm:$0x7] %v616
    // Predicated region
    $region26: #{tpu_custom_call.1} parent=1 // pred_check
      _
    $region27: #{tpu_custom_call.1} parent=1 // pred_check_branch
      %619 = sbr.rel (0) target = $region29
    $region28: #{tpu_custom_call.1} parent=1 // pred_region
      %s621 = ssub.s32 64, 64
      %622 = vsyncadd [#allocation3], %s621
      %s624 = sshll.u32 [#allocation2], 4
      %s625 = int_to_ptr.vmem [resolvable:$true] %s624
      %627 = dma.vmem_to_hbm [thread:$0]  %s625, 64, %s6, [#allocation3]
    $region29: #{tpu_custom_call.1} parent=1 // pred_fallthru
      _
    // Predicated region
    $region30: #{tpu_custom_call.1} parent=1 // pred_check
      _
    $region31: #{tpu_custom_call.1} parent=1 // pred_check_branch
      %629 = sbr.rel (0) target = $region33
    $region32: #{tpu_custom_call.1} parent=1 // pred_region
      %630 = dma.done [#allocation3], 64
    $region33: #{tpu_custom_call.1} parent=1 // pred_fallthru
      _
    %631 = vsyncpa [#allocation3], 1

</llo_original>
